<compile_context>
chip_gen: v5e
topology: v5e:2x2
jax: 0.10.0
libtpu: 0.0.40
codegen_flags: <defaults>
</compile_context>

<pallas_src>
import functools

import jax
import jax.numpy as jnp
from jax.experimental import pallas as pl
from jax.experimental.pallas import tpu as pltpu


def _rowdot(a, b):
    """(M, D) x (N, D) -> (M, N), contracting the last dim of both (no transpose)."""
    return jax.lax.dot_general(
        a, b,
        dimension_numbers=(((1,), (1,)), ((), ())),
        preferred_element_type=jnp.float32,
    )


def _normalize(x):
    # Per-row normalization.  PyTorch's CosineSimilarity clamps the *product*
    # of norms at 1e-8; per-row clamping is equivalent for non-degenerate rows.
    # TODO(synk): exact product-clamp semantics for near-zero embeddings.
    sq = jnp.sum(x * x, axis=-1, keepdims=True)
    return x * jax.lax.rsqrt(jnp.maximum(sq, 1e-16))


def _info_nce_kernel(inv_temp_ref, zi_ref, zj_ref, loss_ref):
    # inv_temp_ref : SMEM f32[1]     -- 1 / temperature
    # zi_ref       : VMEM f32[B, D]  -- resident keys (first half)
    # zj_ref       : VMEM f32[B, D]  -- resident keys (second half)
    # loss_ref     : VMEM f32[TQ, 1] -- fused per-row loss (row a contributes
    #                                   both its z_i-query and z_j-query terms)
    tq = loss_ref.shape[0]
    row0 = pl.multiple_of(pl.program_id(0) * tq, tq)
    inv_temp = inv_temp_ref[0]

    # Normalized keys (full batch, resident) -- O(B*D) VPU work, negligible vs
    # the MXU matmuls / EUP exps below.
    ki_hat = _normalize(zi_ref[...].astype(jnp.float32))     # (B, D)
    kj_hat = _normalize(zj_ref[...].astype(jnp.float32))     # (B, D)

    # Normalized query tiles; fold 1/temperature into the query operand so the
    # MXU output is already sim / temp.
    qi_hat = _normalize(zi_ref[pl.ds(row0, tq), :].astype(jnp.float32))  # (TQ, D)
    qj_hat = _normalize(zj_ref[pl.ds(row0, tq), :].astype(jnp.float32))  # (TQ, D)
    qi_s = qi_hat * inv_temp
    qj_s = qj_hat * inv_temp

    # Scaled exp-logits against both halves of the representation matrix.
    # (cosine sim is in [-1, 1] -> exp argument bounded by 1/temp, so no
    # log-sum-exp stabilization is needed; this matches the reference module.)
    e_ii = jnp.exp(_rowdot(qi_s, ki_hat))                    # (TQ, B)
    e_ij = jnp.exp(_rowdot(qi_s, kj_hat))                    # (TQ, B)
    e_ji = jnp.exp(_rowdot(qj_s, ki_hat))                    # (TQ, B)
    e_jj = jnp.exp(_rowdot(qj_s, kj_hat))                    # (TQ, B)

    # Self-similarity diagonal (== ||q_hat||^2 / temp), subtracted analytically
    # instead of building a (2B, 2B) mask.
    diag_i = jnp.sum(qi_hat * qi_hat, axis=-1, keepdims=True) * inv_temp
    diag_j = jnp.sum(qj_hat * qj_hat, axis=-1, keepdims=True) * inv_temp

    denom_i = (jnp.sum(e_ii, axis=-1, keepdims=True)
               + jnp.sum(e_ij, axis=-1, keepdims=True)
               - jnp.exp(diag_i))                            # (TQ, 1)
    denom_j = (jnp.sum(e_ji, axis=-1, keepdims=True)
               + jnp.sum(e_jj, axis=-1, keepdims=True)
               - jnp.exp(diag_j))                            # (TQ, 1)

    # Positives: sim(z_i[a], z_j[a]) / temp == sim(z_j[a], z_i[a]) / temp.
    pos = jnp.sum(qi_hat * qj_hat, axis=-1, keepdims=True) * inv_temp   # (TQ, 1)

    # Fused contribution of row a from both halves:
    #   -log(e^pos/denom_i) - log(e^pos/denom_j) = log(denom_i*denom_j) - 2*pos
    loss_ref[...] = jnp.log(denom_i * denom_j) - 2.0 * pos


@functools.partial(jax.jit, static_argnames=("temperature", "block_q"))
def info_nce_loss(z_i, z_j, temperature=0.5, block_q=128):
    """JAX/Pallas equivalent of InfoNceLoss.forward(z_i, z_j)."""
    B, D = z_i.shape
    block_q = min(block_q, B)
    if B % block_q != 0:
        # TODO(synk): pad odd batch sizes to a multiple of 8 instead of
        # falling back to a single full-batch tile.
        block_q = B

    inv_temp = jnp.asarray([1.0 / float(temperature)], dtype=jnp.float32)

    loss_rows = pl.pallas_call(
        _info_nce_kernel,
        out_shape=jax.ShapeDtypeStruct((B, 1), jnp.float32),
        grid=(B // block_q,),
        in_specs=[
            pl.BlockSpec(memory_space=pltpu.MemorySpace.SMEM),        # 1/temperature
            pl.BlockSpec((B, D), lambda i: (0, 0)),                   # z_i (resident keys)
            pl.BlockSpec((B, D), lambda i: (0, 0)),                   # z_j (resident keys)
        ],
        out_specs=pl.BlockSpec((block_q, 1), lambda i: (i, 0)),       # fused per-row loss
        compiler_params=pltpu.CompilerParams(
            dimension_semantics=("parallel",),
            vmem_limit_bytes=64 * 1024 * 1024,
        ),
    )(inv_temp, z_i.astype(jnp.float32), z_j.astype(jnp.float32))

    return jnp.sum(loss_rows) / (2.0 * B)


def _info_nce_ref(z_i, z_j, temperature=0.5):
    # Pure-JAX reference mirroring the PyTorch module, for a correctness check.
    b = z_i.shape[0]
    r = jnp.concatenate([z_i, z_j], axis=0).astype(jnp.float32)
    norms = jnp.sqrt(jnp.sum(r * r, axis=-1, keepdims=True))
    sim = (r @ r.T) / jnp.maximum(norms * norms.T, 1e-8)
    sim_ij = jnp.diagonal(sim, offset=b)
    sim_ji = jnp.diagonal(sim, offset=-b)
    positives = jnp.concatenate([sim_ij, sim_ji], axis=0)
    neg_mask = 1.0 - jnp.eye(2 * b, dtype=jnp.float32)
    nominator = jnp.exp(positives / temperature)
    denominator = jnp.sum(neg_mask * jnp.exp(sim / temperature), axis=1)
    loss_partial = -jnp.log(nominator / denominator)
    return jnp.sum(loss_partial) / (2 * b)


if __name__ == "__main__":
    key = jax.random.PRNGKey(0)

    # Small shape consistent with the module's forward (batch of embedding pairs).
    k1, k2 = jax.random.split(key)
    B, D = 8, 32
    z_i = jax.random.normal(k1, (B, D), dtype=jnp.float32)
    z_j = jax.random.normal(k2, (B, D), dtype=jnp.float32)

    loss = info_nce_loss(z_i, z_j, temperature=0.5)
    jax.block_until_ready(loss)
    ref = _info_nce_ref(z_i, z_j, temperature=0.5)
    assert jnp.allclose(loss, ref, rtol=1e-4, atol=1e-5), (loss, ref)

    # Second check exercising the row-tiled grid (grid size > 1).
    k3, k4 = jax.random.split(k2)
    B2, D2 = 256, 128
    z_i2 = jax.random.normal(k3, (B2, D2), dtype=jnp.float32)
    z_j2 = jax.random.normal(k4, (B2, D2), dtype=jnp.float32)
    loss2 = info_nce_loss(z_i2, z_j2, temperature=0.5, block_q=128)
    jax.block_until_ready(loss2)
    ref2 = _info_nce_ref(z_i2, z_j2, temperature=0.5)
    assert jnp.allclose(loss2, ref2, rtol=1e-4, atol=1e-5), (loss2, ref2)

    print("KERNEL_OK")
</pallas_src>

<mosaic_0001>
module attributes {stable_mosaic.version = 11 : i64} {
  func.func @_info_nce_kernel(%arg0: i32, %arg1: memref<1xf32, #tpu.memory_space<smem>>, %arg2: memref<8x32xf32, #tpu.memory_space<vmem>>, %arg3: memref<8x32xf32, #tpu.memory_space<vmem>>, %arg4: memref<8x1xf32, #tpu.memory_space<vmem>>) attributes {dimension_semantics = [#tpu.dimension_semantics<parallel>], iteration_bounds = array<i64: 1>, scalar_prefetch = 0 : i64, scratch_operands = 0 : i64, tpu.core_type = #tpu.core_type<tc>, window_params = [{transform_indices = @transform_0, window_bounds = array<i64: 1>}, {pipeline_mode = #tpu.pipeline_mode<synchronous>, transform_indices = @transform_1, window_bounds = array<i64: 8, 32>}, {pipeline_mode = #tpu.pipeline_mode<synchronous>, transform_indices = @transform_2, window_bounds = array<i64: 8, 32>}, {transform_indices = @transform_3, window_bounds = array<i64: 8, 1>}]} {
    %c8_i32 = arith.constant 8 : i32
    %0 = arith.muli %arg0, %c8_i32 : i32
    %1 = tpu.assume_multiple %0, 8 : i32
    %c0 = arith.constant 0 : index
    %2 = memref.load %arg1[%c0] : memref<1xf32, #tpu.memory_space<smem>>
    %c0_0 = arith.constant 0 : index
    %c0_1 = arith.constant 0 : index
    %3 = vector.load %arg2[%c0_0, %c0_1] : memref<8x32xf32, #tpu.memory_space<vmem>>, vector<8x32xf32>
    %4 = arith.mulf %3, %3 : vector<8x32xf32>
    %cst = arith.constant dense<0.000000e+00> : vector<8xf32>
    %5 = vector.multi_reduction <add>, %4, %cst [1] : vector<8x32xf32> to vector<8xf32>
    %6 = vector.shape_cast %5 : vector<8xf32> to vector<8x1xf32>
    %cst_2 = arith.constant 1.000000e-16 : f32
    %7 = vector.broadcast %cst_2 : f32 to vector<8x1xf32>
    %8 = arith.maximumf %6, %7 : vector<8x1xf32>
    %9 = math.rsqrt %8 : vector<8x1xf32>
    %10 = vector.broadcast %9 : vector<8x1xf32> to vector<8x32xf32>
    %11 = arith.mulf %3, %10 : vector<8x32xf32>
    %c0_3 = arith.constant 0 : index
    %c0_4 = arith.constant 0 : index
    %12 = vector.load %arg3[%c0_3, %c0_4] : memref<8x32xf32, #tpu.memory_space<vmem>>, vector<8x32xf32>
    %13 = arith.mulf %12, %12 : vector<8x32xf32>
    %cst_5 = arith.constant dense<0.000000e+00> : vector<8xf32>
    %14 = vector.multi_reduction <add>, %13, %cst_5 [1] : vector<8x32xf32> to vector<8xf32>
    %15 = vector.shape_cast %14 : vector<8xf32> to vector<8x1xf32>
    %cst_6 = arith.constant 1.000000e-16 : f32
    %16 = vector.broadcast %cst_6 : f32 to vector<8x1xf32>
    %17 = arith.maximumf %15, %16 : vector<8x1xf32>
    %18 = math.rsqrt %17 : vector<8x1xf32>
    %19 = vector.broadcast %18 : vector<8x1xf32> to vector<8x32xf32>
    %20 = arith.mulf %12, %19 : vector<8x32xf32>
    %21 = arith.index_cast %1 : i32 to index
    %c0_7 = arith.constant 0 : index
    %22 = vector.load %arg2[%21, %c0_7] : memref<8x32xf32, #tpu.memory_space<vmem>>, vector<8x32xf32>
    %23 = arith.mulf %22, %22 : vector<8x32xf32>
    %cst_8 = arith.constant dense<0.000000e+00> : vector<8xf32>
    %24 = vector.multi_reduction <add>, %23, %cst_8 [1] : vector<8x32xf32> to vector<8xf32>
    %25 = vector.shape_cast %24 : vector<8xf32> to vector<8x1xf32>
    %cst_9 = arith.constant 1.000000e-16 : f32
    %26 = vector.broadcast %cst_9 : f32 to vector<8x1xf32>
    %27 = arith.maximumf %25, %26 : vector<8x1xf32>
    %28 = math.rsqrt %27 : vector<8x1xf32>
    %29 = vector.broadcast %28 : vector<8x1xf32> to vector<8x32xf32>
    %30 = arith.mulf %22, %29 : vector<8x32xf32>
    %31 = arith.index_cast %1 : i32 to index
    %c0_10 = arith.constant 0 : index
    %32 = vector.load %arg3[%31, %c0_10] : memref<8x32xf32, #tpu.memory_space<vmem>>, vector<8x32xf32>
    %33 = arith.mulf %32, %32 : vector<8x32xf32>
    %cst_11 = arith.constant dense<0.000000e+00> : vector<8xf32>
    %34 = vector.multi_reduction <add>, %33, %cst_11 [1] : vector<8x32xf32> to vector<8xf32>
    %35 = vector.shape_cast %34 : vector<8xf32> to vector<8x1xf32>
    %cst_12 = arith.constant 1.000000e-16 : f32
    %36 = vector.broadcast %cst_12 : f32 to vector<8x1xf32>
    %37 = arith.maximumf %35, %36 : vector<8x1xf32>
    %38 = math.rsqrt %37 : vector<8x1xf32>
    %39 = vector.broadcast %38 : vector<8x1xf32> to vector<8x32xf32>
    %40 = arith.mulf %32, %39 : vector<8x32xf32>
    %41 = vector.broadcast %2 : f32 to vector<8x32xf32>
    %42 = arith.mulf %30, %41 : vector<8x32xf32>
    %43 = vector.broadcast %2 : f32 to vector<8x32xf32>
    %44 = arith.mulf %40, %43 : vector<8x32xf32>
    %cst_13 = arith.constant dense<0.000000e+00> : vector<8x8xf32>
    %45 = tpu.matmul %42, %11, %cst_13 {dimension_numbers = #tpu.dot_dimension_numbers<[1], [1], [0], [0], [0, 0, 1, 0], [], []>} : vector<8x32xf32>, vector<8x32xf32>, vector<8x8xf32> -> vector<8x8xf32>
    %46 = math.exp %45 : vector<8x8xf32>
    %cst_14 = arith.constant dense<0.000000e+00> : vector<8x8xf32>
    %47 = tpu.matmul %42, %20, %cst_14 {dimension_numbers = #tpu.dot_dimension_numbers<[1], [1], [0], [0], [0, 0, 1, 0], [], []>} : vector<8x32xf32>, vector<8x32xf32>, vector<8x8xf32> -> vector<8x8xf32>
    %48 = math.exp %47 : vector<8x8xf32>
    %cst_15 = arith.constant dense<0.000000e+00> : vector<8x8xf32>
    %49 = tpu.matmul %44, %11, %cst_15 {dimension_numbers = #tpu.dot_dimension_numbers<[1], [1], [0], [0], [0, 0, 1, 0], [], []>} : vector<8x32xf32>, vector<8x32xf32>, vector<8x8xf32> -> vector<8x8xf32>
    %50 = math.exp %49 : vector<8x8xf32>
    %cst_16 = arith.constant dense<0.000000e+00> : vector<8x8xf32>
    %51 = tpu.matmul %44, %20, %cst_16 {dimension_numbers = #tpu.dot_dimension_numbers<[1], [1], [0], [0], [0, 0, 1, 0], [], []>} : vector<8x32xf32>, vector<8x32xf32>, vector<8x8xf32> -> vector<8x8xf32>
    %52 = math.exp %51 : vector<8x8xf32>
    %53 = arith.mulf %30, %30 : vector<8x32xf32>
    %cst_17 = arith.constant dense<0.000000e+00> : vector<8xf32>
    %54 = vector.multi_reduction <add>, %53, %cst_17 [1] : vector<8x32xf32> to vector<8xf32>
    %55 = vector.shape_cast %54 : vector<8xf32> to vector<8x1xf32>
    %56 = vector.broadcast %2 : f32 to vector<8x1xf32>
    %57 = arith.mulf %55, %56 : vector<8x1xf32>
    %58 = arith.mulf %40, %40 : vector<8x32xf32>
    %cst_18 = arith.constant dense<0.000000e+00> : vector<8xf32>
    %59 = vector.multi_reduction <add>, %58, %cst_18 [1] : vector<8x32xf32> to vector<8xf32>
    %60 = vector.shape_cast %59 : vector<8xf32> to vector<8x1xf32>
    %61 = vector.broadcast %2 : f32 to vector<8x1xf32>
    %62 = arith.mulf %60, %61 : vector<8x1xf32>
    %cst_19 = arith.constant dense<0.000000e+00> : vector<8xf32>
    %63 = vector.multi_reduction <add>, %46, %cst_19 [1] : vector<8x8xf32> to vector<8xf32>
    %64 = vector.shape_cast %63 : vector<8xf32> to vector<8x1xf32>
    %cst_20 = arith.constant dense<0.000000e+00> : vector<8xf32>
    %65 = vector.multi_reduction <add>, %48, %cst_20 [1] : vector<8x8xf32> to vector<8xf32>
    %66 = vector.shape_cast %65 : vector<8xf32> to vector<8x1xf32>
    %67 = arith.addf %64, %66 : vector<8x1xf32>
    %68 = math.exp %57 : vector<8x1xf32>
    %69 = arith.subf %67, %68 : vector<8x1xf32>
    %cst_21 = arith.constant dense<0.000000e+00> : vector<8xf32>
    %70 = vector.multi_reduction <add>, %50, %cst_21 [1] : vector<8x8xf32> to vector<8xf32>
    %71 = vector.shape_cast %70 : vector<8xf32> to vector<8x1xf32>
    %cst_22 = arith.constant dense<0.000000e+00> : vector<8xf32>
    %72 = vector.multi_reduction <add>, %52, %cst_22 [1] : vector<8x8xf32> to vector<8xf32>
    %73 = vector.shape_cast %72 : vector<8xf32> to vector<8x1xf32>
    %74 = arith.addf %71, %73 : vector<8x1xf32>
    %75 = math.exp %62 : vector<8x1xf32>
    %76 = arith.subf %74, %75 : vector<8x1xf32>
    %77 = arith.mulf %30, %40 : vector<8x32xf32>
    %cst_23 = arith.constant dense<0.000000e+00> : vector<8xf32>
    %78 = vector.multi_reduction <add>, %77, %cst_23 [1] : vector<8x32xf32> to vector<8xf32>
    %79 = vector.shape_cast %78 : vector<8xf32> to vector<8x1xf32>
    %80 = vector.broadcast %2 : f32 to vector<8x1xf32>
    %81 = arith.mulf %79, %80 : vector<8x1xf32>
    %82 = arith.mulf %69, %76 : vector<8x1xf32>
    %83 = math.log %82 : vector<8x1xf32>
    %cst_24 = arith.constant 2.000000e+00 : f32
    %84 = vector.broadcast %cst_24 : f32 to vector<8x1xf32>
    %85 = arith.mulf %84, %81 : vector<8x1xf32>
    %86 = arith.subf %83, %85 : vector<8x1xf32>
    %c0_25 = arith.constant 0 : index
    %c0_26 = arith.constant 0 : index
    %87 = vector.load %arg4[%c0_25, %c0_26] : memref<8x1xf32, #tpu.memory_space<vmem>>, vector<8x1xf32>
    tpu.vector_store %arg4[%c0_25, %c0_26], %86 {strides = array<i32>} : memref<8x1xf32, #tpu.memory_space<vmem>>, vector<8x1xf32>,
    return
  }
  func.func @transform_0(%arg0: i32) -> i32 {
    %c0_i32 = arith.constant 0 : i32
    %c0_i32_0 = arith.constant 0 : i32
    return %c0_i32 : i32
  }
  func.func @transform_1(%arg0: i32) -> (i32, i32) {
    %c0_i32 = arith.constant 0 : i32
    %c0_i32_0 = arith.constant 0 : i32
    %c0_i32_1 = arith.constant 0 : i32
    return %c0_i32, %c0_i32_0 : i32, i32
  }
  func.func @transform_2(%arg0: i32) -> (i32, i32) {
    %c0_i32 = arith.constant 0 : i32
    %c0_i32_0 = arith.constant 0 : i32
    %c0_i32_1 = arith.constant 0 : i32
    return %c0_i32, %c0_i32_0 : i32, i32
  }
  func.func @transform_3(%arg0: i32) -> (i32, i32) {
    %c0_i32 = arith.constant 0 : i32
    %c0_i32_0 = arith.constant 0 : i32
    return %arg0, %c0_i32 : i32, i32
  }
}

</mosaic_0001>

<llo_original>
// kernel: info_nce_loss.1
$region0: #{info_nce_loss.1}
  #allocation0 [shape = 'u32[]', space=smem, size = 0x4, offset = 0x4, fixed_abs, tag = 'smem constant byte address 0x4 - core index']
  #allocation1 [shape = 'u32[72,128]{1,0:T(1,128)}', space=vmem, size = 0x9000, scoped, tag = 'internal scratch']
  #allocation2 [shape = 'f32[1]{0:T(128)S(6)}', space=smem, size = 0x200, scoped, tag = 'scoped memory for info_nce_loss.1']
  %s0 = inlined_call_operand.<no memory space> [shape: f32[1], index: 0, kind: input, shape index: {}]
  %s1 = inlined_call_operand.hbm [shape: f32[8,32], index: 1, kind: input, shape index: {}]
  %s2 = inlined_call_operand.hbm [shape: f32[8,32], index: 2, kind: input, shape index: {}]
  %s3 = inlined_call_operand.vmem [shape: f32[8,1], index: 3, kind: output, shape index: {}]
  %s4 = sld [smem:[#allocation0]]
  $region30: #{info_nce_loss.1} parent=0
    _
  %s6 = ssub.s32 1, %s4
  %s7 = scalar_select 0, %s6, %s4
  %8 = sst [smem:[#allocation2]] %s0
  $region1: #{info_nce_loss.1} parent=0
    #allocation3 [shape = 'u8[4096]{0}', space=vmem, size = 0x1000, scoped, tag = 'input window, operand 1, single buffered']
    #allocation4 [shape = 's32[1]{0}', space=sflag, size = 0x4, scoped, tag = 'scoped memory for info_nce_loss.1']
    #allocation5 [shape = 'u8[4096]{0}', space=vmem, size = 0x1000, scoped, tag = 'input window, operand 2, single buffered']
    #allocation6 [shape = 's32[1]{0}', space=sflag, size = 0x4, scoped, tag = 'scoped memory for info_nce_loss.1']
    %9 = vsyncpa [#allocation4], 0
    %10 = vsyncpa [#allocation6], 0
    // Predicated region
    $region2: #{info_nce_loss.1} parent=1 // pred_check
      _
    $region3: #{info_nce_loss.1} parent=1 // pred_check_branch
      %12 = sbr.rel (0) target = $region5
    $region4: #{info_nce_loss.1} parent=1 // pred_region
      _
    $region5: #{info_nce_loss.1} parent=1 // pred_fallthru
      _
    // Predicated region
    $region6: #{info_nce_loss.1} parent=1 // pred_check
      _
    $region7: #{info_nce_loss.1} parent=1 // pred_check_branch
      %14 = sbr.rel (0) target = $region9
    $region8: #{info_nce_loss.1} parent=1 // pred_region
      %16 = vsyncadd [#allocation4], 0
      %s18 = sshll.u32 %s1, 4
      %s19 = int_to_ptr.hbm [resolvable:$true] %s18
      %s20 = sshll.u32 [#allocation3], 4
      %s21 = int_to_ptr.vmem [resolvable:$true] %s20
      %23 = dma.hbm_to_vmem [thread:$0]  %s19, 128, %s21, [#allocation4]
    $region9: #{info_nce_loss.1} parent=1 // pred_fallthru
      _
    // Predicated region
    $region10: #{info_nce_loss.1} parent=1 // pred_check
      _
    $region11: #{info_nce_loss.1} parent=1 // pred_check_branch
      %25 = sbr.rel (0) target = $region13
    $region12: #{info_nce_loss.1} parent=1 // pred_region
      %27 = vsyncadd [#allocation6], 0
      %s29 = sshll.u32 %s2, 4
      %s30 = int_to_ptr.hbm [resolvable:$true] %s29
      %s31 = sshll.u32 [#allocation5], 4
      %s32 = int_to_ptr.vmem [resolvable:$true] %s31
      %34 = dma.hbm_to_vmem [thread:$0]  %s30, 128, %s32, [#allocation6]
    $region13: #{info_nce_loss.1} parent=1 // pred_fallthru
      _
    // Predicated region
    $region14: #{info_nce_loss.1} parent=1 // pred_check
      _
    $region15: #{info_nce_loss.1} parent=1 // pred_check_branch
      %36 = sbr.rel (0) target = $region17
    $region16: #{info_nce_loss.1} parent=1 // pred_region
      %38 = dma.done [#allocation4], 128
    $region17: #{info_nce_loss.1} parent=1 // pred_fallthru
      _
    // Predicated region
    $region18: #{info_nce_loss.1} parent=1 // pred_check
      _
    $region19: #{info_nce_loss.1} parent=1 // pred_check_branch
      %40 = sbr.rel (0) target = $region21
    $region20: #{info_nce_loss.1} parent=1 // pred_region
      %42 = dma.done [#allocation6], 128
    $region21: #{info_nce_loss.1} parent=1 // pred_fallthru
      _
    %s43 = smul.u32 0, 8
    %s44 = sld [smem:[#allocation2]]
    %v45 = vld [vmem:[#allocation3] sm:$0xff]
    %v46 = vmul.f32 %v45, %v45
    %vm47 = vcmask 261120
    %v48 = vsel %vm47, %v46, 0.0
    %49 = vadd.xlane.f32.xlu0 %v48
    %v50 = vpop.xlane.xlu0 %49
    %v51 = vmax.f32 %v50, 1e-16
    %v52 = vrsqrt.pop %v51
    %v53 = vmul.f32 %v52, %v51
    %v54 = vmul.f32 %v53, %v52
    %v55 = vmul.f32 0.5, %v54
    %v56 = vsub.f32 1.5, %v55
    %v57 = vmul.f32 %v52, %v56
    %vm58 = vweird.f32 %v51
    %vm59 = vweird.f32 %v52
    %vm60 = vmor %vm58, %vm59
    %v61 = vsel %vm60, %v52, %v57
    %v62 = vmul.f32 %v45, %v61
    %v63 = vld [vmem:[#allocation5] sm:$0xff]
    %v64 = vmul.f32 %v63, %v63
    %v65 = vsel %vm47, %v64, 0.0
    %66 = vadd.xlane.f32.xlu0 %v65
    %v67 = vpop.xlane.xlu0 %66
    %v68 = vmax.f32 %v67, 1e-16
    %v69 = vrsqrt.pop %v68
    %v70 = vmul.f32 %v69, %v68
    %v71 = vmul.f32 %v70, %v69
    %v72 = vmul.f32 0.5, %v71
    %v73 = vsub.f32 1.5, %v72
    %v74 = vmul.f32 %v69, %v73
    %vm75 = vweird.f32 %v68
    %vm76 = vweird.f32 %v69
    %vm77 = vmor %vm75, %vm76
    %v78 = vsel %vm77, %v69, %v74
    %v79 = vmul.f32 %v63, %v78
    %s80 = scalar_lea.vmem [#allocation3], %s43
    %v81 = vld [vmem:[%s80] sm:$0xff]
    %v82 = vmul.f32 %v81, %v81
    %v83 = vsel %vm47, %v82, 0.0
    %84 = vadd.xlane.f32.xlu0 %v83
    %v85 = vpop.xlane.xlu0 %84
    %v86 = vmax.f32 %v85, 1e-16
    %v87 = vrsqrt.pop %v86
    %v88 = vmul.f32 %v87, %v86
    %v89 = vmul.f32 %v88, %v87
    %v90 = vmul.f32 0.5, %v89
    %v91 = vsub.f32 1.5, %v90
    %v92 = vmul.f32 %v87, %v91
    %vm93 = vweird.f32 %v86
    %vm94 = vweird.f32 %v87
    %vm95 = vmor %vm93, %vm94
    %v96 = vsel %vm95, %v87, %v92
    %v97 = vmul.f32 %v81, %v96
    %s98 = scalar_lea.vmem [#allocation5], %s43
    %v99 = vld [vmem:[%s98] sm:$0xff]
    %v100 = vmul.f32 %v99, %v99
    %v101 = vsel %vm47, %v100, 0.0
    %102 = vadd.xlane.f32.xlu0 %v101
    %v103 = vpop.xlane.xlu0 %102
    %v104 = vmax.f32 %v103, 1e-16
    %v105 = vrsqrt.pop %v104
    %v106 = vmul.f32 %v105, %v104
    %v107 = vmul.f32 %v106, %v105
    %v108 = vmul.f32 0.5, %v107
    %v109 = vsub.f32 1.5, %v108
    %v110 = vmul.f32 %v105, %v109
    %vm111 = vweird.f32 %v104
    %vm112 = vweird.f32 %v105
    %vm113 = vmor %vm111, %vm112
    %v114 = vsel %vm113, %v105, %v110
    %v115 = vmul.f32 %v99, %v114
    %v116 = vstv %s44
    %v117 = vmul.f32 %v97, %v116
    %v118 = vmul.f32 %v115, %v116
    %v120 = vsel %vm47, %v117, 0
    %v123 = vsel %vm47, %v62, 0
    %125 = vmatpush.xpose.msra.mxu0 0.0
    %126 = vmatpush.xpose.msra.mxu0 0.0
    %127 = vmatpush.xpose.msra.mxu0 0.0
    %128 = vmatpush.xpose.msra.mxu0 0.0
    %129 = vmatpush.xpose.msra.mxu0 0.0
    %130 = vmatpush.xpose.msra.mxu0 0.0
    %131 = vmatpush.xpose.msra.mxu0 0.0
    %132 = vmatpush.xpose.msra.mxu0 0.0
    %133 = vmatpush.xpose.msra.mxu0 0.0
    %134 = vmatpush.xpose.msra.mxu0 0.0
    %135 = vmatpush.xpose.msra.mxu0 0.0
    %136 = vmatpush.xpose.msra.mxu0 0.0
    %137 = vmatpush.xpose.msra.mxu0 0.0
    %138 = vmatpush.xpose.msra.mxu0 0.0
    %139 = vmatpush.xpose.msra.mxu0 0.0
    %140 = vmatpush.xpose.msra.mxu0 %v123
    %141 = vmatmul.f32.gmra.mxu0 %v120
    %v142 = vpop.f32.mrf.mxu0
    %v143 = vadd.f32 0.0, %v142
    %144 = vdwg.mxu0
    %v145 = vmul.f32 %v143, 1.442695
    %v146 = vpow.pop %v145
    %v148 = vsel %vm47, %v79, 0
    %150 = vmatpush.xpose.msra.mxu0 0.0
    %151 = vmatpush.xpose.msra.mxu0 0.0
    %152 = vmatpush.xpose.msra.mxu0 0.0
    %153 = vmatpush.xpose.msra.mxu0 0.0
    %154 = vmatpush.xpose.msra.mxu0 0.0
    %155 = vmatpush.xpose.msra.mxu0 0.0
    %156 = vmatpush.xpose.msra.mxu0 0.0
    %157 = vmatpush.xpose.msra.mxu0 0.0
    %158 = vmatpush.xpose.msra.mxu0 0.0
    %159 = vmatpush.xpose.msra.mxu0 0.0
    %160 = vmatpush.xpose.msra.mxu0 0.0
    %161 = vmatpush.xpose.msra.mxu0 0.0
    %162 = vmatpush.xpose.msra.mxu0 0.0
    %163 = vmatpush.xpose.msra.mxu0 0.0
    %164 = vmatpush.xpose.msra.mxu0 0.0
    %165 = vmatpush.xpose.msra.mxu0 %v148
    %166 = vmatmul.f32.gmra.mxu0 %v120
    %v167 = vpop.f32.mrf.mxu0
    %v168 = vadd.f32 0.0, %v167
    %169 = vdwg.mxu0
    %v170 = vmul.f32 %v168, 1.442695
    %v171 = vpow.pop %v170
    %v173 = vsel %vm47, %v118, 0
    %175 = vmatpush.xpose.msra.mxu0 0.0
    %176 = vmatpush.xpose.msra.mxu0 0.0
    %177 = vmatpush.xpose.msra.mxu0 0.0
    %178 = vmatpush.xpose.msra.mxu0 0.0
    %179 = vmatpush.xpose.msra.mxu0 0.0
    %180 = vmatpush.xpose.msra.mxu0 0.0
    %181 = vmatpush.xpose.msra.mxu0 0.0
    %182 = vmatpush.xpose.msra.mxu0 0.0
    %183 = vmatpush.xpose.msra.mxu0 0.0
    %184 = vmatpush.xpose.msra.mxu0 0.0
    %185 = vmatpush.xpose.msra.mxu0 0.0
    %186 = vmatpush.xpose.msra.mxu0 0.0
    %187 = vmatpush.xpose.msra.mxu0 0.0
    %188 = vmatpush.xpose.msra.mxu0 0.0
    %189 = vmatpush.xpose.msra.mxu0 0.0
    %190 = vmatpush.xpose.msra.mxu0 %v123
    %191 = vmatmul.f32.gmra.mxu0 %v173
    %v192 = vpop.f32.mrf.mxu0
    %v193 = vadd.f32 0.0, %v192
    %194 = vdwg.mxu0
    %v195 = vmul.f32 %v193, 1.442695
    %v196 = vpow.pop %v195
    %197 = vmatpush.xpose.msra.mxu0 0.0
    %198 = vmatpush.xpose.msra.mxu0 0.0
    %199 = vmatpush.xpose.msra.mxu0 0.0
    %200 = vmatpush.xpose.msra.mxu0 0.0
    %201 = vmatpush.xpose.msra.mxu0 0.0
    %202 = vmatpush.xpose.msra.mxu0 0.0
    %203 = vmatpush.xpose.msra.mxu0 0.0
    %204 = vmatpush.xpose.msra.mxu0 0.0
    %205 = vmatpush.xpose.msra.mxu0 0.0
    %206 = vmatpush.xpose.msra.mxu0 0.0
    %207 = vmatpush.xpose.msra.mxu0 0.0
    %208 = vmatpush.xpose.msra.mxu0 0.0
    %209 = vmatpush.xpose.msra.mxu0 0.0
    %210 = vmatpush.xpose.msra.mxu0 0.0
    %211 = vmatpush.xpose.msra.mxu0 0.0
    %212 = vmatpush.xpose.msra.mxu0 %v148
    %213 = vmatmul.f32.gmra.mxu0 %v173
    %v214 = vpop.f32.mrf.mxu0
    %v215 = vadd.f32 0.0, %v214
    %216 = vdwg.mxu0
    %v217 = vmul.f32 %v215, 1.442695
    %v218 = vpow.pop %v217
    %v219 = vmul.f32 %v97, %v97
    %v220 = vsel %vm47, %v219, 0.0
    %221 = vadd.xlane.f32.xlu0 %v220
    %v222 = vpop.xlane.xlu0 %221
    %v223 = vmul.f32 %v222, %v116
    %v224 = vmul.f32 %v115, %v115
    %v225 = vsel %vm47, %v224, 0.0
    %226 = vadd.xlane.f32.xlu0 %v225
    %v227 = vpop.xlane.xlu0 %226
    %v228 = vmul.f32 %v227, %v116
    %vm229 = vcmask 64512
    %v230 = vsel %vm229, %v146, 0.0
    %231 = vadd.xlane.f32.xlu0 %v230
    %v232 = vpop.xlane.xlu0 %231
    %v233 = vsel %vm229, %v171, 0.0
    %234 = vadd.xlane.f32.xlu0 %v233
    %v235 = vpop.xlane.xlu0 %234
    %v236 = vadd.f32 %v232, %v235
    %v237 = vmul.f32 %v223, 1.442695
    %v238 = vpow.pop %v237
    %v239 = vsub.f32 %v236, %v238
    %v240 = vsel %vm229, %v196, 0.0
    %241 = vadd.xlane.f32.xlu0 %v240
    %v242 = vpop.xlane.xlu0 %241
    %v243 = vsel %vm229, %v218, 0.0
    %244 = vadd.xlane.f32.xlu0 %v243
    %v245 = vpop.xlane.xlu0 %244
    %v246 = vadd.f32 %v242, %v245
    %v247 = vmul.f32 %v228, 1.442695
    %v248 = vpow.pop %v247
    %v249 = vsub.f32 %v246, %v248
    %v250 = vmul.f32 %v97, %v115
    %v251 = vsel %vm47, %v250, 0.0
    %252 = vadd.xlane.f32.xlu0 %v251
    %v253 = vpop.xlane.xlu0 %252
    %v254 = vmul.f32 %v253, %v116
    %v255 = vmul.f32 %v239, %v249
    %v256 = vlog2.pop %v255
    %v257 = vmul.f32 %v256, 0.6931472
    %v258 = vmul.f32 %v254, 2.0
    %v259 = vsub.f32 %v257, %v258
    %vm260 = vcmask 7168
    %261 = vst.msk [vmem:[%s3] sm:$0xff] %vm260, %v259
    // Predicated region
    $region22: #{info_nce_loss.1} parent=1 // pred_check
      _
    $region23: #{info_nce_loss.1} parent=1 // pred_check_branch
      %263 = sbr.rel (0) target = $region25
    $region24: #{info_nce_loss.1} parent=1 // pred_region
      _
    $region25: #{info_nce_loss.1} parent=1 // pred_fallthru
      _
    // Predicated region
    $region26: #{info_nce_loss.1} parent=1 // pred_check
      _
    $region27: #{info_nce_loss.1} parent=1 // pred_check_branch
      %265 = sbr.rel (0) target = $region29
    $region28: #{info_nce_loss.1} parent=1 // pred_region
      _
    $region29: #{info_nce_loss.1} parent=1 // pred_fallthru
      _
    %266 = vsyncpa [#allocation4], 1
    %267 = vsyncpa [#allocation6], 1

</llo_original>
